<compile_context>
chip_gen: v6e
topology: v6e:2x2x1
jax: 0.10.0
libtpu: 0.0.40
codegen_flags: <defaults>
</compile_context>

<pallas_src>
import functools

import jax
import jax.numpy as jnp
from jax import lax
from jax.experimental import pallas as pl
from jax.experimental.pallas import tpu as pltpu


# --------------------------------------------------------------------------
# Pallas kernel: one batch element per grid step.
# --------------------------------------------------------------------------
def _res_kernel(H, W, add,
                x_ref,    # (1, C1, H*W)  f32   input, flattened NCHW
                w1_ref,   # (Cm, C1)      bf16  cv1 1x1 (BN-folded)
                b1_ref,   # (Cm, 1)       f32
                w2_ref,   # (Cm, 9*Cm)    bf16  cv2 3x3 (BN-folded, im2col layout)
                b2_ref,   # (Cm, 1)       f32
                w3_ref,   # (C2, Cm)      bf16  cv3 1x1 (BN-folded)
                b3_ref,   # (C2, 1)       f32
                o_ref):   # (1, C2, H*W)  f32
    HW = H * W
    Cm = w1_ref.shape[0]

    x = x_ref[0]                                               # (C1, HW) f32

    # ---- cv1: 1x1 conv + BN + SiLU  (channels on sublanes, pixels on lanes)
    a1 = jnp.dot(w1_ref[...], x.astype(jnp.bfloat16),
                 preferred_element_type=jnp.float32) + b1_ref[...]
    y1 = a1 * jax.nn.sigmoid(a1)                               # (Cm, HW) f32

    # ---- cv2: 3x3 conv (pad=1) + BN + SiLU, via flat-shift im2col + 1 matmul
    # Pad the flattened row by (W+1) zeros on each side; tap (kh, kw) is then
    # the static lane slice starting at kh*W + kw.  The zero pad handles the
    # top/bottom halo; left/right halo (column wrap-around of the flat index)
    # is fixed with a per-column mask.
    zpad = jnp.zeros((Cm, W + 1), jnp.float32)
    y1p = jnp.concatenate([zpad, y1, zpad], axis=1)            # (Cm, HW+2W+2)

    w_idx = lax.broadcasted_iota(jnp.int32, (1, HW), 1) % W
    not_first_col = w_idx != 0          # taps reading column w-1 invalid at w=0
    not_last_col = w_idx != (W - 1)     # taps reading column w+1 invalid at w=W-1

    taps = []
    for kh in range(3):
        for kw in range(3):
            start = kh * W + kw
            tap = lax.slice_in_dim(y1p, start, start + HW, axis=1)  # (Cm, HW)
            if kw == 0:
                tap = jnp.where(not_first_col, tap, 0.0)
            elif kw == 2:
                tap = jnp.where(not_last_col, tap, 0.0)
            taps.append(tap)
    taps_all = jnp.concatenate(taps, axis=0).astype(jnp.bfloat16)   # (9*Cm, HW)

    a2 = jnp.dot(w2_ref[...], taps_all,
                 preferred_element_type=jnp.float32) + b2_ref[...]
    y2 = a2 * jax.nn.sigmoid(a2)                               # (Cm, HW) f32

    # ---- cv3: 1x1 conv + BN + SiLU
    a3 = jnp.dot(w3_ref[...], y2.astype(jnp.bfloat16),
                 preferred_element_type=jnp.float32) + b3_ref[...]
    y3 = a3 * jax.nn.sigmoid(a3)                               # (C2, HW) f32

    o_ref[0] = (y3 + x) if add else y3                         # residual in f32


# --------------------------------------------------------------------------
# Wrapper: weight layout conversion (BN already folded), pallas_call.
# --------------------------------------------------------------------------
def res_pallas(x_nchw, fused_params, shortcut=True):
    """x_nchw: (N, C1, H, W) f32.  fused_params: BN-folded OIHW weights/biases."""
    # TODO(synk): grouped conv (g > 1) path not implemented; Res default g=1.
    (w1_oihw, b1), (w2_oihw, b2), (w3_oihw, b3) = fused_params
    N, C1, H, W = x_nchw.shape
    Cm = w1_oihw.shape[0]
    C2 = w3_oihw.shape[0]
    HW = H * W
    add = bool(shortcut and C1 == C2)

    # Free bitcast reshape: kernel works directly on flattened NCHW.
    x_flat = x_nchw.reshape(N, C1, HW)

    # Weights as (Cout, Cin) / (Cout, 9*Cin), bf16 MXU operands.
    w1_k = w1_oihw.reshape(Cm, C1).astype(jnp.bfloat16)
    w3_k = w3_oihw.reshape(C2, Cm).astype(jnp.bfloat16)
    # OIHW -> (Cout, 9*Cin) with K index = (kh*3 + kw)*Cin + cin (matches taps).
    w2_k = jnp.transpose(w2_oihw, (2, 3, 1, 0)).reshape(9 * Cm, Cm).T
    w2_k = w2_k.astype(jnp.bfloat16)
    b1_k = b1.reshape(Cm, 1).astype(jnp.float32)
    b2_k = b2.reshape(Cm, 1).astype(jnp.float32)
    b3_k = b3.reshape(C2, 1).astype(jnp.float32)

    flops = 2 * N * HW * (C1 * Cm + 9 * Cm * Cm + Cm * C2)
    transcendentals = N * HW * (2 * Cm + C2)
    bytes_accessed = (x_flat.size * 4
                      + (w1_k.size + w2_k.size + w3_k.size) * 2
                      + (b1_k.size + b2_k.size + b3_k.size) * 4
                      + N * C2 * HW * 4)

    kern = functools.partial(_res_kernel, H, W, add)
    out = pl.pallas_call(
        kern,
        out_shape=jax.ShapeDtypeStruct((N, C2, HW), jnp.float32),
        grid=(N,),
        in_specs=[
            pl.BlockSpec((1, C1, HW), lambda n: (n, 0, 0)),
            pl.BlockSpec((Cm, C1), lambda n: (0, 0)),
            pl.BlockSpec((Cm, 1), lambda n: (0, 0)),
            pl.BlockSpec((Cm, 9 * Cm), lambda n: (0, 0)),
            pl.BlockSpec((Cm, 1), lambda n: (0, 0)),
            pl.BlockSpec((C2, Cm), lambda n: (0, 0)),
            pl.BlockSpec((C2, 1), lambda n: (0, 0)),
        ],
        out_specs=pl.BlockSpec((1, C2, HW), lambda n: (n, 0, 0)),
        compiler_params=pltpu.CompilerParams(
            dimension_semantics=("parallel",),
            # Explicit scoped-VMEM budget (tiny here; raise / H-strip tile the
            # grid for realistic YOLO shapes, esp. on v7x's 64 MiB VMEM).
            vmem_limit_bytes=32 * 1024 * 1024,
        ),
        cost_estimate=pl.CostEstimate(
            flops=int(flops),
            transcendentals=int(transcendentals),
            bytes_accessed=int(bytes_accessed),
        ),
    )(x_flat, w1_k, b1_k, w2_k, b2_k, w3_k, b3_k)
    return out.reshape(N, C2, H, W)


# --------------------------------------------------------------------------
# Deterministic synthetic parameters (conv weight + BatchNorm, then folded).
# --------------------------------------------------------------------------
def _make_conv_bn_fused(key, cin, cout, k, eps=1e-5):
    k1, k2, k3, k4, k5 = jax.random.split(key, 5)
    w = 0.1 * jax.random.normal(k1, (cout, cin, k, k), jnp.float32)   # OIHW, no bias
    gamma = 1.0 + 0.1 * jax.random.normal(k2, (cout,), jnp.float32)
    beta = 0.1 * jax.random.normal(k3, (cout,), jnp.float32)
    mean = 0.1 * jax.random.normal(k4, (cout,), jnp.float32)
    var = jnp.abs(jax.random.normal(k5, (cout,), jnp.float32)) + 0.5
    scale = gamma / jnp.sqrt(var + eps)
    w_fused = w * scale[:, None, None, None]
    b_fused = beta - mean * scale
    return w_fused, b_fused


# --------------------------------------------------------------------------
# Pure-JAX reference with identical mixed-precision numerics (bf16 operands,
# f32 accumulation) for the correctness check.
# --------------------------------------------------------------------------
def _silu(x):
    return x * jax.nn.sigmoid(x)


def _conv_nchw_bf16(x, w_oihw, pad):
    return lax.conv_general_dilated(
        x.astype(jnp.bfloat16), w_oihw.astype(jnp.bfloat16),
        window_strides=(1, 1), padding=((pad, pad), (pad, pad)),
        dimension_numbers=("NCHW", "OIHW", "NCHW"),
        preferred_element_type=jnp.float32)


def res_ref(x_nchw, fused_params, shortcut=True):
    (w1, b1), (w2, b2), (w3, b3) = fused_params
    add = shortcut and x_nchw.shape[1] == w3.shape[0]
    y1 = _silu(_conv_nchw_bf16(x_nchw, w1, 0) + b1[None, :, None, None])
    y2 = _silu(_conv_nchw_bf16(y1, w2, 1) + b2[None, :, None, None])
    y3 = _silu(_conv_nchw_bf16(y2, w3, 0) + b3[None, :, None, None])
    return x_nchw + y3 if add else y3


# --------------------------------------------------------------------------
if __name__ == "__main__":
    # Res(c1=4, c2=4, shortcut=True, g=1, e=0.5)  ->  c_ = 2
    c1, c2, e = 4, 4, 0.5
    c_mid = int(c2 * e)
    N, H, W = 2, 16, 16

    key = jax.random.PRNGKey(0)
    kx, k1, k2, k3 = jax.random.split(key, 4)

    x_nchw = jax.random.normal(kx, (N, c1, H, W), jnp.float32)   # PyTorch layout

    fused_params = (
        _make_conv_bn_fused(k1, c1, c_mid, 1),     # cv1: 1x1 + BN
        _make_conv_bn_fused(k2, c_mid, c_mid, 3),  # cv2: 3x3 + BN
        _make_conv_bn_fused(k3, c_mid, c2, 1),     # cv3: 1x1 + BN
    )

    out = jax.block_until_ready(res_pallas(x_nchw, fused_params, shortcut=True))
    ref = res_ref(x_nchw, fused_params, shortcut=True)

    assert out.shape == (N, c2, H, W)
    max_err = float(jnp.max(jnp.abs(out - ref)))
    assert jnp.allclose(out, ref, atol=2e-3, rtol=2e-3), max_err

    print("KERNEL_OK")
</pallas_src>

<mosaic_0001>
module attributes {stable_mosaic.version = 11 : i64} {
  func.func @_res_kernel(%arg0: i32, %arg1: memref<1x4x256xf32, #tpu.memory_space<vmem>>, %arg2: memref<2x4xbf16, #tpu.memory_space<vmem>>, %arg3: memref<2x1xf32, #tpu.memory_space<vmem>>, %arg4: memref<2x18xbf16, #tpu.memory_space<vmem>>, %arg5: memref<2x1xf32, #tpu.memory_space<vmem>>, %arg6: memref<4x2xbf16, #tpu.memory_space<vmem>>, %arg7: memref<4x1xf32, #tpu.memory_space<vmem>>, %arg8: memref<1x4x256xf32, #tpu.memory_space<vmem>>) attributes {dimension_semantics = [#tpu.dimension_semantics<parallel>], iteration_bounds = array<i64: 2>, scalar_prefetch = 0 : i64, scratch_operands = 0 : i64, tpu.core_type = #tpu.core_type<tc>, window_params = [{transform_indices = @transform_0, window_bounds = array<i64: 1, 4, 256>}, {pipeline_mode = #tpu.pipeline_mode<synchronous>, transform_indices = @transform_1, window_bounds = array<i64: 2, 4>}, {pipeline_mode = #tpu.pipeline_mode<synchronous>, transform_indices = @transform_2, window_bounds = array<i64: 2, 1>}, {pipeline_mode = #tpu.pipeline_mode<synchronous>, transform_indices = @transform_3, window_bounds = array<i64: 2, 18>}, {pipeline_mode = #tpu.pipeline_mode<synchronous>, transform_indices = @transform_4, window_bounds = array<i64: 2, 1>}, {pipeline_mode = #tpu.pipeline_mode<synchronous>, transform_indices = @transform_5, window_bounds = array<i64: 4, 2>}, {pipeline_mode = #tpu.pipeline_mode<synchronous>, transform_indices = @transform_6, window_bounds = array<i64: 4, 1>}, {transform_indices = @transform_7, window_bounds = array<i64: 1, 4, 256>}]} {
    %c0 = arith.constant 0 : index
    %c0_0 = arith.constant 0 : index
    %c0_1 = arith.constant 0 : index
    %0 = vector.load %arg1[%c0, %c0_0, %c0_1] : memref<1x4x256xf32, #tpu.memory_space<vmem>>, vector<1x4x256xf32>
    %1 = vector.shape_cast %0 : vector<1x4x256xf32> to vector<4x256xf32>
    %c0_2 = arith.constant 0 : index
    %c0_3 = arith.constant 0 : index
    %2 = vector.load %arg2[%c0_2, %c0_3] : memref<2x4xbf16, #tpu.memory_space<vmem>>, vector<2x4xbf16>
    %3 = arith.truncf %1 : vector<4x256xf32> to vector<4x256xbf16>
    %cst = arith.constant dense<0.000000e+00> : vector<2x256xf32>
    %4 = tpu.matmul %2, %3, %cst {dimension_numbers = #tpu.dot_dimension_numbers<[1], [0], [0], [1], [0, 0, 1, 1], [], []>} : vector<2x4xbf16>, vector<4x256xbf16>, vector<2x256xf32> -> vector<2x256xf32>
    %c0_4 = arith.constant 0 : index
    %c0_5 = arith.constant 0 : index
    %5 = vector.load %arg3[%c0_4, %c0_5] : memref<2x1xf32, #tpu.memory_space<vmem>>, vector<2x1xf32>
    %6 = vector.broadcast %5 : vector<2x1xf32> to vector<2x256xf32>
    %7 = arith.addf %4, %6 : vector<2x256xf32>
    %8 = arith.negf %7 : vector<2x256xf32>
    %9 = math.exp %8 : vector<2x256xf32>
    %cst_6 = arith.constant 1.000000e+00 : f32
    %10 = vector.broadcast %cst_6 : f32 to vector<2x256xf32>
    %11 = arith.addf %10, %9 : vector<2x256xf32>
    %12 = arith.divf %10, %11 : vector<2x256xf32>
    %13 = arith.mulf %7, %12 : vector<2x256xf32>
    %cst_7 = arith.constant 0.000000e+00 : f32
    %14 = vector.broadcast %cst_7 : f32 to vector<2x17xf32>
    %15 = tpu.concatenate %14, %13, %14 in 1 : vector<2x17xf32>, vector<2x256xf32>, vector<2x17xf32> -> vector<2x290xf32>
    %16 = tpu.iota {dimensions = array<i32: 1>} : vector<1x256xi32>
    %c16_i32 = arith.constant 16 : i32
    %c0_i32 = arith.constant 0 : i32
    %17 = arith.cmpi eq, %c16_i32, %c0_i32 : i32
    %c1_i32 = arith.constant 1 : i32
    %18 = arith.select %17, %c1_i32, %c16_i32 : i32
    %19 = vector.broadcast %18 : i32 to vector<1x256xi32>
    %20 = arith.remsi %16, %19 : vector<1x256xi32>
    %c0_i32_8 = arith.constant 0 : i32
    %21 = vector.broadcast %c0_i32_8 : i32 to vector<1x256xi32>
    %22 = arith.cmpi ne, %20, %21 : vector<1x256xi32>
    %c0_i32_9 = arith.constant 0 : i32
    %23 = vector.broadcast %c0_i32_9 : i32 to vector<1x256xi32>
    %24 = arith.cmpi slt, %20, %23 : vector<1x256xi32>
    %c0_i32_10 = arith.constant 0 : i32
    %25 = arith.cmpi slt, %18, %c0_i32_10 : i32
    %26 = vector.broadcast %25 : i1 to vector<1x256xi1>
    %27 = vector.broadcast %26 : vector<1x256xi1> to vector<1x256xi1>
    %28 = arith.xori %24, %27 : vector<1x256xi1>
    %29 = arith.andi %28, %22 : vector<1x256xi1>
    %30 = vector.broadcast %18 : i32 to vector<1x256xi32>
    %31 = arith.addi %20, %30 : vector<1x256xi32>
    %32 = arith.select %29, %31, %20 : vector<1x256xi1>, vector<1x256xi32>
    %c0_i32_11 = arith.constant 0 : i32
    %33 = vector.broadcast %c0_i32_11 : i32 to vector<1x256xi32>
    %34 = arith.cmpi ne, %32, %33 : vector<1x256xi32>
    %c15_i32 = arith.constant 15 : i32
    %35 = vector.broadcast %c15_i32 : i32 to vector<1x256xi32>
    %36 = arith.cmpi ne, %32, %35 : vector<1x256xi32>
    %37 = vector.extract_strided_slice %15 {offsets = [0, 0], sizes = [2, 256], strides = [1, 1]} : vector<2x290xf32> to vector<2x256xf32>
    %cst_12 = arith.constant 0.000000e+00 : f32
    %38 = vector.shape_cast %34 : vector<1x256xi1> to vector<1x256xi1>
    %39 = vector.broadcast %38 : vector<1x256xi1> to vector<2x256xi1>
    %40 = vector.broadcast %cst_12 : f32 to vector<2x256xf32>
    %41 = arith.select %39, %37, %40 : vector<2x256xi1>, vector<2x256xf32>
    %42 = vector.extract_strided_slice %15 {offsets = [0, 1], sizes = [2, 256], strides = [1, 1]} : vector<2x290xf32> to vector<2x256xf32>
    %43 = vector.extract_strided_slice %15 {offsets = [0, 2], sizes = [2, 256], strides = [1, 1]} : vector<2x290xf32> to vector<2x256xf32>
    %cst_13 = arith.constant 0.000000e+00 : f32
    %44 = vector.shape_cast %36 : vector<1x256xi1> to vector<1x256xi1>
    %45 = vector.broadcast %44 : vector<1x256xi1> to vector<2x256xi1>
    %46 = vector.broadcast %cst_13 : f32 to vector<2x256xf32>
    %47 = arith.select %45, %43, %46 : vector<2x256xi1>, vector<2x256xf32>
    %48 = vector.extract_strided_slice %15 {offsets = [0, 16], sizes = [2, 256], strides = [1, 1]} : vector<2x290xf32> to vector<2x256xf32>
    %cst_14 = arith.constant 0.000000e+00 : f32
    %49 = vector.shape_cast %34 : vector<1x256xi1> to vector<1x256xi1>
    %50 = vector.broadcast %49 : vector<1x256xi1> to vector<2x256xi1>
    %51 = vector.broadcast %cst_14 : f32 to vector<2x256xf32>
    %52 = arith.select %50, %48, %51 : vector<2x256xi1>, vector<2x256xf32>
    %53 = vector.extract_strided_slice %15 {offsets = [0, 17], sizes = [2, 256], strides = [1, 1]} : vector<2x290xf32> to vector<2x256xf32>
    %54 = vector.extract_strided_slice %15 {offsets = [0, 18], sizes = [2, 256], strides = [1, 1]} : vector<2x290xf32> to vector<2x256xf32>
    %cst_15 = arith.constant 0.000000e+00 : f32
    %55 = vector.shape_cast %36 : vector<1x256xi1> to vector<1x256xi1>
    %56 = vector.broadcast %55 : vector<1x256xi1> to vector<2x256xi1>
    %57 = vector.broadcast %cst_15 : f32 to vector<2x256xf32>
    %58 = arith.select %56, %54, %57 : vector<2x256xi1>, vector<2x256xf32>
    %59 = vector.extract_strided_slice %15 {offsets = [0, 32], sizes = [2, 256], strides = [1, 1]} : vector<2x290xf32> to vector<2x256xf32>
    %cst_16 = arith.constant 0.000000e+00 : f32
    %60 = vector.shape_cast %34 : vector<1x256xi1> to vector<1x256xi1>
    %61 = vector.broadcast %60 : vector<1x256xi1> to vector<2x256xi1>
    %62 = vector.broadcast %cst_16 : f32 to vector<2x256xf32>
    %63 = arith.select %61, %59, %62 : vector<2x256xi1>, vector<2x256xf32>
    %64 = vector.extract_strided_slice %15 {offsets = [0, 33], sizes = [2, 256], strides = [1, 1]} : vector<2x290xf32> to vector<2x256xf32>
    %65 = vector.extract_strided_slice %15 {offsets = [0, 34], sizes = [2, 256], strides = [1, 1]} : vector<2x290xf32> to vector<2x256xf32>
    %cst_17 = arith.constant 0.000000e+00 : f32
    %66 = vector.shape_cast %36 : vector<1x256xi1> to vector<1x256xi1>
    %67 = vector.broadcast %66 : vector<1x256xi1> to vector<2x256xi1>
    %68 = vector.broadcast %cst_17 : f32 to vector<2x256xf32>
    %69 = arith.select %67, %65, %68 : vector<2x256xi1>, vector<2x256xf32>
    %70 = tpu.concatenate %41, %42, %47, %52, %53, %58, %63, %64, %69 in 0 : vector<2x256xf32>, vector<2x256xf32>, vector<2x256xf32>, vector<2x256xf32>, vector<2x256xf32>, vector<2x256xf32>, vector<2x256xf32>, vector<2x256xf32>, vector<2x256xf32> -> vector<18x256xf32>
    %71 = arith.truncf %70 : vector<18x256xf32> to vector<18x256xbf16>
    %c0_18 = arith.constant 0 : index
    %c0_19 = arith.constant 0 : index
    %72 = vector.load %arg4[%c0_18, %c0_19] : memref<2x18xbf16, #tpu.memory_space<vmem>>, vector<2x18xbf16>
    %cst_20 = arith.constant dense<0.000000e+00> : vector<2x256xf32>
    %73 = tpu.matmul %72, %71, %cst_20 {dimension_numbers = #tpu.dot_dimension_numbers<[1], [0], [0], [1], [0, 0, 1, 1], [], []>} : vector<2x18xbf16>, vector<18x256xbf16>, vector<2x256xf32> -> vector<2x256xf32>
    %c0_21 = arith.constant 0 : index
    %c0_22 = arith.constant 0 : index
    %74 = vector.load %arg5[%c0_21, %c0_22] : memref<2x1xf32, #tpu.memory_space<vmem>>, vector<2x1xf32>
    %75 = vector.broadcast %74 : vector<2x1xf32> to vector<2x256xf32>
    %76 = arith.addf %73, %75 : vector<2x256xf32>
    %77 = arith.negf %76 : vector<2x256xf32>
    %78 = math.exp %77 : vector<2x256xf32>
    %cst_23 = arith.constant 1.000000e+00 : f32
    %79 = vector.broadcast %cst_23 : f32 to vector<2x256xf32>
    %80 = arith.addf %79, %78 : vector<2x256xf32>
    %81 = arith.divf %79, %80 : vector<2x256xf32>
    %82 = arith.mulf %76, %81 : vector<2x256xf32>
    %c0_24 = arith.constant 0 : index
    %c0_25 = arith.constant 0 : index
    %83 = vector.load %arg6[%c0_24, %c0_25] : memref<4x2xbf16, #tpu.memory_space<vmem>>, vector<4x2xbf16>
    %84 = arith.truncf %82 : vector<2x256xf32> to vector<2x256xbf16>
    %cst_26 = arith.constant dense<0.000000e+00> : vector<4x256xf32>
    %85 = tpu.matmul %83, %84, %cst_26 {dimension_numbers = #tpu.dot_dimension_numbers<[1], [0], [0], [1], [0, 0, 1, 1], [], []>} : vector<4x2xbf16>, vector<2x256xbf16>, vector<4x256xf32> -> vector<4x256xf32>
    %c0_27 = arith.constant 0 : index
    %c0_28 = arith.constant 0 : index
    %86 = vector.load %arg7[%c0_27, %c0_28] : memref<4x1xf32, #tpu.memory_space<vmem>>, vector<4x1xf32>
    %87 = vector.broadcast %86 : vector<4x1xf32> to vector<4x256xf32>
    %88 = arith.addf %85, %87 : vector<4x256xf32>
    %89 = arith.negf %88 : vector<4x256xf32>
    %90 = math.exp %89 : vector<4x256xf32>
    %cst_29 = arith.constant 1.000000e+00 : f32
    %91 = vector.broadcast %cst_29 : f32 to vector<4x256xf32>
    %92 = arith.addf %91, %90 : vector<4x256xf32>
    %93 = arith.divf %91, %92 : vector<4x256xf32>
    %94 = arith.mulf %88, %93 : vector<4x256xf32>
    %95 = arith.addf %94, %1 : vector<4x256xf32>
    %c0_30 = arith.constant 0 : index
    %c0_31 = arith.constant 0 : index
    %c0_32 = arith.constant 0 : index
    %96 = vector.load %arg8[%c0_30, %c0_31, %c0_32] : memref<1x4x256xf32, #tpu.memory_space<vmem>>, vector<1x4x256xf32>
    %97 = vector.shape_cast %96 : vector<1x4x256xf32> to vector<4x256xf32>
    %98 = vector.shape_cast %95 : vector<4x256xf32> to vector<1x4x256xf32>
    tpu.vector_store %arg8[%c0_30, %c0_31, %c0_32], %98 {strides = array<i32>} : memref<1x4x256xf32, #tpu.memory_space<vmem>>, vector<1x4x256xf32>,
    return
  }
  func.func @transform_0(%arg0: i32) -> (i32, i32, i32) {
    %c0_i32 = arith.constant 0 : i32
    %c0_i32_0 = arith.constant 0 : i32
    %c0_i32_1 = arith.constant 0 : i32
    return %arg0, %c0_i32, %c0_i32_0 : i32, i32, i32
  }
  func.func @transform_1(%arg0: i32) -> (i32, i32) {
    %c0_i32 = arith.constant 0 : i32
    %c0_i32_0 = arith.constant 0 : i32
    %c0_i32_1 = arith.constant 0 : i32
    return %c0_i32, %c0_i32_0 : i32, i32
  }
  func.func @transform_2(%arg0: i32) -> (i32, i32) {
    %c0_i32 = arith.constant 0 : i32
    %c0_i32_0 = arith.constant 0 : i32
    %c0_i32_1 = arith.constant 0 : i32
    return %c0_i32, %c0_i32_0 : i32, i32
  }
  func.func @transform_3(%arg0: i32) -> (i32, i32) {
    %c0_i32 = arith.constant 0 : i32
    %c0_i32_0 = arith.constant 0 : i32
    %c0_i32_1 = arith.constant 0 : i32
    return %c0_i32, %c0_i32_0 : i32, i32
  }
  func.func @transform_4(%arg0: i32) -> (i32, i32) {
    %c0_i32 = arith.constant 0 : i32
    %c0_i32_0 = arith.constant 0 : i32
    %c0_i32_1 = arith.constant 0 : i32
    return %c0_i32, %c0_i32_0 : i32, i32
  }
  func.func @transform_5(%arg0: i32) -> (i32, i32) {
    %c0_i32 = arith.constant 0 : i32
    %c0_i32_0 = arith.constant 0 : i32
    %c0_i32_1 = arith.constant 0 : i32
    return %c0_i32, %c0_i32_0 : i32, i32
  }
  func.func @transform_6(%arg0: i32) -> (i32, i32) {
    %c0_i32 = arith.constant 0 : i32
    %c0_i32_0 = arith.constant 0 : i32
    %c0_i32_1 = arith.constant 0 : i32
    return %c0_i32, %c0_i32_0 : i32, i32
  }
  func.func @transform_7(%arg0: i32) -> (i32, i32, i32) {
    %c0_i32 = arith.constant 0 : i32
    %c0_i32_0 = arith.constant 0 : i32
    %c0_i32_1 = arith.constant 0 : i32
    return %arg0, %c0_i32, %c0_i32_0 : i32, i32, i32
  }
}

</mosaic_0001>

<llo_original>
// kernel: tpu_custom_call.1
$region0: #{tpu_custom_call.1}
  #allocation0 [shape = 'u32[]', space=smem, size = 0x4, offset = 0x4, fixed_abs, tag = 'smem constant byte address 0x4 - core index']
  #allocation1 [shape = 'u32[144,128]{1,0:T(1,128)}', space=vmem, size = 0x12000, scoped, tag = 'internal scratch']
  %s0 = inlined_call_operand.hbm [shape: f32[2,4,256], index: 0, kind: input, shape index: {}]
  %s1 = inlined_call_operand.vmem [shape: bf16[2,4], index: 1, kind: input, shape index: {}]
  %s2 = inlined_call_operand.vmem [shape: f32[2,1], index: 2, kind: input, shape index: {}]
  %s3 = inlined_call_operand.vmem [shape: bf16[2,18], index: 3, kind: input, shape index: {}]
  %s4 = inlined_call_operand.vmem [shape: f32[2,1], index: 4, kind: input, shape index: {}]
  %s5 = inlined_call_operand.vmem [shape: bf16[4,2], index: 5, kind: input, shape index: {}]
  %s6 = inlined_call_operand.vmem [shape: f32[4,1], index: 6, kind: input, shape index: {}]
  %s7 = inlined_call_operand.hbm [shape: f32[2,4,256], index: 7, kind: output, shape index: {}]
  %s8 = sld [smem:[#allocation0]]
  $region65: #{tpu_custom_call.1} parent=0
    _
  %s10 = ssub.s32 1, %s8
  %s11 = scalar_select 0, %s10, %s8
  $region1: #{tpu_custom_call.1} parent=0
    #allocation2 [shape = 'u8[8192]{0}', space=vmem, size = 0x2000, scoped, tag = 'input window, operand 0']
    #allocation3 [shape = 's32[2]{0}', space=sflag, size = 0x8, scoped, tag = 'scoped memory for tpu_custom_call.1']
    #allocation4 [shape = 's32[2]{0}', space=sflag, size = 0x8, scoped, tag = 'scoped memory for tpu_custom_call.1']
    #allocation5 [shape = 'u8[8192]{0}', space=vmem, size = 0x2000, scoped, tag = 'output window, operand 0']
    %12 = vsyncpa [#allocation3], 0
    %s13 = scalar_lea.sflag [#allocation3], 1
    %14 = vsyncpa %s13, 0
    %15 = vsyncpa [#allocation4], 0
    %s16 = scalar_lea.sflag [#allocation4], 1
    %17 = vsyncpa %s16, 0
    loop: start=0, step=1, limit=4
    $region2: #{tpu_custom_call.1} parent=1 // loop_pre_header
      _
    $region3: #{tpu_custom_call.1} parent=1 // loop_header
      %s19 = sphi 0, %s23
      %p20 = scmp.ge.s32.totalorder %s19, 4
      %s29 = sphi 0, %s31
      %s32 = sphi 0, %s29
      %s33 = sphi 0, %s32
      %s49 = sphi 0, %s33
      %s53 = sphi 0, %s53
      %s55 = sphi 0, %s53
      %s56 = sphi 0, %s55
      %s70 = sphi 0, %s56
      %s74 = sphi 0, %s74
      %s76 = sphi 0, %s74
      %s77 = sphi 0, %s76
      %s91 = sphi 0, %s77
      %s95 = sphi 0, %s95
      %s97 = sphi 0, %s95
      %s98 = sphi 0, %s97
      %s112 = sphi 0, %s98
      %s116 = sphi 0, %s116
      %s118 = sphi 0, %s116
      %s119 = sphi 0, %s118
      %s133 = sphi 0, %s119
      %s137 = sphi 0, %s137
      %s139 = sphi 0, %s137
      %s140 = sphi 0, %s139
      %s154 = sphi 0, %s140
      %s158 = sphi 0, %s158
      %s160 = sphi 0, %s158
      %s161 = sphi 0, %s160
      %s175 = sphi 0, %s161
      %s181 = sphi 0, %s183
      %s184 = sphi 0, %s181
      %s185 = sphi 0, %s184
      %s201 = sphi 0, %s185
    $region4: #{tpu_custom_call.1} parent=1 // loop_header_branch
      %22 = sbr.rel (%p20) target = $region8
    $region5: #{tpu_custom_call.1} parent=1 // loop_body
      %s24 = ssub.s32 %s19, 1
      %s25 = ssub.s32 %s19, 2
      %s26 = sadd.s32 %s19, 1
      %s27 = ssub.s32 %s19, %s26
      %p28 = scmp.eq.s32.totalorder %s27, 0
      %s30 = sadd.s32 %s29, 1
      %s31 = scalar_select %p28, %s29, %s30
      %p34 = pneg %p28
      %p35 = scmp.eq.s32.totalorder %s19, 1
      %p36 = por %p34, %p35
      %p37 = scmp.ne.s32.totalorder %s29, %s32
      %p38 = scmp.eq.s32.totalorder %s19, 0
      %p39 = por %p37, %p38
      %p40 = scmp.ne.s32.totalorder %s29, %s32
      %p41 = scmp.eq.s32.totalorder %s24, 1
      %p42 = por %p40, %p41
      %p43 = scmp.ne.s32.totalorder %s32, %s33
      %p44 = scmp.eq.s32.totalorder %s24, 0
      %p45 = por %p43, %p44
      %p46 = scmp.ne.s32.totalorder %s32, %s33
      %p47 = scmp.eq.s32.totalorder %s25, 1
      %p48 = por %p46, %p47
      %p50 = scmp.ne.s32.totalorder %s33, %s49
      %p51 = scmp.eq.s32.totalorder %s25, 0
      %p52 = por %p50, %p51
      %s54 = sadd.s32 %s53, 1
      %p57 = scmp.eq.s32.totalorder %s19, 1
      %p58 = scmp.ne.s32.totalorder %s53, %s55
      %p59 = scmp.eq.s32.totalorder %s19, 0
      %p60 = por %p58, %p59
      %p61 = scmp.ne.s32.totalorder %s53, %s55
      %p62 = scmp.eq.s32.totalorder %s24, 1
      %p63 = por %p61, %p62
      %p64 = scmp.ne.s32.totalorder %s55, %s56
      %p65 = scmp.eq.s32.totalorder %s24, 0
      %p66 = por %p64, %p65
      %p67 = scmp.ne.s32.totalorder %s55, %s56
      %p68 = scmp.eq.s32.totalorder %s25, 1
      %p69 = por %p67, %p68
      %p71 = scmp.ne.s32.totalorder %s56, %s70
      %p72 = scmp.eq.s32.totalorder %s25, 0
      %p73 = por %p71, %p72
      %s75 = sadd.s32 %s74, 1
      %p78 = scmp.eq.s32.totalorder %s19, 1
      %p79 = scmp.ne.s32.totalorder %s74, %s76
      %p80 = scmp.eq.s32.totalorder %s19, 0
      %p81 = por %p79, %p80
      %p82 = scmp.ne.s32.totalorder %s74, %s76
      %p83 = scmp.eq.s32.totalorder %s24, 1
      %p84 = por %p82, %p83
      %p85 = scmp.ne.s32.totalorder %s76, %s77
      %p86 = scmp.eq.s32.totalorder %s24, 0
      %p87 = por %p85, %p86
      %p88 = scmp.ne.s32.totalorder %s76, %s77
      %p89 = scmp.eq.s32.totalorder %s25, 1
      %p90 = por %p88, %p89
      %p92 = scmp.ne.s32.totalorder %s77, %s91
      %p93 = scmp.eq.s32.totalorder %s25, 0
      %p94 = por %p92, %p93
      %s96 = sadd.s32 %s95, 1
      %p99 = scmp.eq.s32.totalorder %s19, 1
      %p100 = scmp.ne.s32.totalorder %s95, %s97
      %p101 = scmp.eq.s32.totalorder %s19, 0
      %p102 = por %p100, %p101
      %p103 = scmp.ne.s32.totalorder %s95, %s97
      %p104 = scmp.eq.s32.totalorder %s24, 1
      %p105 = por %p103, %p104
      %p106 = scmp.ne.s32.totalorder %s97, %s98
      %p107 = scmp.eq.s32.totalorder %s24, 0
      %p108 = por %p106, %p107
      %p109 = scmp.ne.s32.totalorder %s97, %s98
      %p110 = scmp.eq.s32.totalorder %s25, 1
      %p111 = por %p109, %p110
      %p113 = scmp.ne.s32.totalorder %s98, %s112
      %p114 = scmp.eq.s32.totalorder %s25, 0
      %p115 = por %p113, %p114
      %s117 = sadd.s32 %s116, 1
      %p120 = scmp.eq.s32.totalorder %s19, 1
      %p121 = scmp.ne.s32.totalorder %s116, %s118
      %p122 = scmp.eq.s32.totalorder %s19, 0
      %p123 = por %p121, %p122
      %p124 = scmp.ne.s32.totalorder %s116, %s118
      %p125 = scmp.eq.s32.totalorder %s24, 1
      %p126 = por %p124, %p125
      %p127 = scmp.ne.s32.totalorder %s118, %s119
      %p128 = scmp.eq.s32.totalorder %s24, 0
      %p129 = por %p127, %p128
      %p130 = scmp.ne.s32.totalorder %s118, %s119
      %p131 = scmp.eq.s32.totalorder %s25, 1
      %p132 = por %p130, %p131
      %p134 = scmp.ne.s32.totalorder %s119, %s133
      %p135 = scmp.eq.s32.totalorder %s25, 0
      %p136 = por %p134, %p135
      %s138 = sadd.s32 %s137, 1
      %p141 = scmp.eq.s32.totalorder %s19, 1
      %p142 = scmp.ne.s32.totalorder %s137, %s139
      %p143 = scmp.eq.s32.totalorder %s19, 0
      %p144 = por %p142, %p143
      %p145 = scmp.ne.s32.totalorder %s137, %s139
      %p146 = scmp.eq.s32.totalorder %s24, 1
      %p147 = por %p145, %p146
      %p148 = scmp.ne.s32.totalorder %s139, %s140
      %p149 = scmp.eq.s32.totalorder %s24, 0
      %p150 = por %p148, %p149
      %p151 = scmp.ne.s32.totalorder %s139, %s140
      %p152 = scmp.eq.s32.totalorder %s25, 1
      %p153 = por %p151, %p152
      %p155 = scmp.ne.s32.totalorder %s140, %s154
      %p156 = scmp.eq.s32.totalorder %s25, 0
      %p157 = por %p155, %p156
      %s159 = sadd.s32 %s158, 1
      %p162 = scmp.eq.s32.totalorder %s19, 1
      %p163 = scmp.ne.s32.totalorder %s158, %s160
      %p164 = scmp.eq.s32.totalorder %s19, 0
      %p165 = por %p163, %p164
      %p166 = scmp.ne.s32.totalorder %s158, %s160
      %p167 = scmp.eq.s32.totalorder %s24, 1
      %p168 = por %p166, %p167
      %p169 = scmp.ne.s32.totalorder %s160, %s161
      %p170 = scmp.eq.s32.totalorder %s24, 0
      %p171 = por %p169, %p170
      %p172 = scmp.ne.s32.totalorder %s160, %s161
      %p173 = scmp.eq.s32.totalorder %s25, 1
      %p174 = por %p172, %p173
      %p176 = scmp.ne.s32.totalorder %s161, %s175
      %p177 = scmp.eq.s32.totalorder %s25, 0
      %p178 = por %p176, %p177
      %s179 = ssub.s32 %s19, %s26
      %p180 = scmp.eq.s32.totalorder %s179, 0
      %s182 = sadd.s32 %s181, 1
      %s183 = scalar_select %p180, %s181, %s182
      %p186 = pneg %p180
      %p187 = scmp.eq.s32.totalorder %s19, 1
      %p188 = por %p186, %p187
      %p189 = scmp.ne.s32.totalorder %s181, %s184
      %p190 = scmp.eq.s32.totalorder %s19, 0
      %p191 = por %p189, %p190
      %p192 = scmp.ne.s32.totalorder %s181, %s184
      %p193 = scmp.eq.s32.totalorder %s24, 1
      %p194 = por %p192, %p193
      %p195 = scmp.ne.s32.totalorder %s184, %s185
      %p196 = scmp.eq.s32.totalorder %s24, 0
      %p197 = por %p195, %p196
      %p198 = scmp.ne.s32.totalorder %s184, %s185
      %p199 = scmp.eq.s32.totalorder %s25, 1
      %p200 = por %p198, %p199
      %p202 = scmp.ne.s32.totalorder %s185, %s201
      %p203 = scmp.eq.s32.totalorder %s25, 0
      %p204 = por %p202, %p203
      %p205 = scmp.le.s32.totalorder 1, %s19
      %p206 = scmp.lt.s32.totalorder %s19, 3
      %p207 = pnand %p205, %p206
      %p208 = pneg %p207
      // Predicated region
      $region9: #{tpu_custom_call.1} parent=5 // pred_check
        _
      $region10: #{tpu_custom_call.1} parent=5 // pred_check_branch
        %210 = sbr.rel (%p207) target = $region12
      $region11: #{tpu_custom_call.1} parent=5 // pred_region
        %s211 = ssub.s32 %s19, 1
        // Predicated region
        $region13: #{tpu_custom_call.1} parent=11 // pred_check
          %p212 = pneg %p66
        $region14: #{tpu_custom_call.1} parent=11 // pred_check_branch
          %214 = sbr.rel (%p212) target = $region16
        $region15: #{tpu_custom_call.1} parent=11 // pred_region
          _
        $region16: #{tpu_custom_call.1} parent=11 // pred_fallthru
          _
        // Predicated region
        $region17: #{tpu_custom_call.1} parent=11 // pred_check
          %p215 = pneg %p87
        $region18: #{tpu_custom_call.1} parent=11 // pred_check_branch
          %217 = sbr.rel (%p215) target = $region20
        $region19: #{tpu_custom_call.1} parent=11 // pred_region
          _
        $region20: #{tpu_custom_call.1} parent=11 // pred_fallthru
          _
        // Predicated region
        $region21: #{tpu_custom_call.1} parent=11 // pred_check
          %p218 = pneg %p108
        $region22: #{tpu_custom_call.1} parent=11 // pred_check_branch
          %220 = sbr.rel (%p218) target = $region24
        $region23: #{tpu_custom_call.1} parent=11 // pred_region
          _
        $region24: #{tpu_custom_call.1} parent=11 // pred_fallthru
          _
        // Predicated region
        $region25: #{tpu_custom_call.1} parent=11 // pred_check
          %p221 = pneg %p129
        $region26: #{tpu_custom_call.1} parent=11 // pred_check_branch
          %223 = sbr.rel (%p221) target = $region28
        $region27: #{tpu_custom_call.1} parent=11 // pred_region
          _
        $region28: #{tpu_custom_call.1} parent=11 // pred_fallthru
          _
        // Predicated region
        $region29: #{tpu_custom_call.1} parent=11 // pred_check
          %p224 = pneg %p150
        $region30: #{tpu_custom_call.1} parent=11 // pred_check_branch
          %226 = sbr.rel (%p224) target = $region32
        $region31: #{tpu_custom_call.1} parent=11 // pred_region
          _
        $region32: #{tpu_custom_call.1} parent=11 // pred_fallthru
          _
        // Predicated region
        $region33: #{tpu_custom_call.1} parent=11 // pred_check
          %p227 = pneg %p171
        $region34: #{tpu_custom_call.1} parent=11 // pred_check_branch
          %229 = sbr.rel (%p227) target = $region36
        $region35: #{tpu_custom_call.1} parent=11 // pred_region
          _
        $region36: #{tpu_custom_call.1} parent=11 // pred_fallthru
          _
      $region12: #{tpu_custom_call.1} parent=5 // pred_fallthru
        _
      %p230 = scmp.lt.s32.totalorder %s19, 2
      // Predicated region
      $region37: #{tpu_custom_call.1} parent=5 // pred_check
        %p231 = pneg %p230
      $region38: #{tpu_custom_call.1} parent=5 // pred_check_branch
        %233 = sbr.rel (%p231) target = $region40
      $region39: #{tpu_custom_call.1} parent=5 // pred_region
        // Predicated region
        $region41: #{tpu_custom_call.1} parent=39 // pred_check
          %p234 = pneg %p39
        $region42: #{tpu_custom_call.1} parent=39 // pred_check_branch
          %236 = sbr.rel (%p234) target = $region44
        $region43: #{tpu_custom_call.1} parent=39 // pred_region
          %s237 = sand.u32 %s29, 1
          %s238 = scalar_lea.sflag [#allocation3], %s237
          %s239 = sand.u32 %s29, 1
          %s240 = smul.addr %s239, 8
          %s241 = scalar_lea.vmem [#allocation2], %s240
          %s243 = ssub.s32 128, 128
          %244 = vsyncadd %s238, %s243
          %s245 = smul.addr %s19, 2
          %s246 = smul.addr %s245, 64
          %s247 = scalar_lea.hbm %s0, %s246
          %s249 = sshll.u32 %s241, 4
          %s250 = int_to_ptr.vmem [resolvable:$true] %s249
          %252 = dma.hbm_to_vmem [thread:$0]  %s247, 128, %s250, %s238
        $region44: #{tpu_custom_call.1} parent=39 // pred_fallthru
          _
      $region40: #{tpu_custom_call.1} parent=5 // pred_fallthru
        _
      %p253 = scmp.le.s32.totalorder 1, %s19
      %p254 = scmp.lt.s32.totalorder %s19, 3
      %p255 = pnand %p253, %p254
      %p256 = pneg %p255
      // Predicated region
      $region45: #{tpu_custom_call.1} parent=5 // pred_check
        _
      $region46: #{tpu_custom_call.1} parent=5 // pred_check_branch
        %258 = sbr.rel (%p255) target = $region48
      $region47: #{tpu_custom_call.1} parent=5 // pred_region
        %s259 = ssub.s32 %s19, 1
        %s260 = sand.u32 %s32, 1
        %s261 = scalar_lea.sflag [#allocation3], %s260
        %s262 = sand.u32 %s32, 1
        %s263 = smul.addr %s262, 8
        %s264 = scalar_lea.vmem [#allocation2], %s263
        // Predicated region
        $region49: #{tpu_custom_call.1} parent=47 // pred_check
          %p265 = pneg %p45
        $region50: #{tpu_custom_call.1} parent=47 // pred_check_branch
          %267 = sbr.rel (%p265) target = $region52
        $region51: #{tpu_custom_call.1} parent=47 // pred_region
          %268 = dma.done %s261, 128
        $region52: #{tpu_custom_call.1} parent=47 // pred_fallthru
          _
        %s269 = sand.u32 %s32, 1
        %s270 = scalar_lea.sflag [#allocation3], %s269
        %s271 = sand.u32 %s32, 1
        %s272 = smul.addr %s271, 8
        %s273 = scalar_lea.vmem [#allocation2], %s272
        %p274 = pneg %p45
        %p275 = pneg %p42
        %p276 = pneg %p66
        %p277 = pneg %p63
        %p278 = pneg %p87
        %p279 = pneg %p84
        %p280 = pneg %p108
        %p281 = pneg %p105
        %p282 = pneg %p129
        %p283 = pneg %p126
        %p284 = pneg %p150
        %p285 = pneg %p147
        %p286 = pneg %p171
        %p287 = pneg %p168
        %p288 = pneg %p197
        %p289 = pneg %p194
        %s290 = sand.u32 %s184, 1
        %s291 = scalar_lea.sflag [#allocation4], %s290
        %s292 = sand.u32 %s184, 1
        %s293 = smul.addr %s292, 8
        %s294 = scalar_lea.vmem [#allocation5], %s293
        %v296 = vld [vmem:[%s264] sm:$0xff]
        %v297 = vld [vmem:[%s1] sm:$0x1]
        %v299 = vcombine.high %v296, %v296
        %v301 = vpack.c.bf16 %v296, %v296
        %v302 = vpack.c.bf16 %v299, %v299
        %v303 = vld [vmem:[%s2] sm:$0x3]
        %305 = vset.pattern.permute.xlu0 0
        %306 = vperm.xlu0 %305, %v303
        %v307 = vpop.permute.xlu0 %306
        %vm309 = vcmask 31744
        %v311 = vsel %vm309, %v297, 0
        %vm313 = vcmask 1041408
        %v315 = vsel %vm313, %v301, 0
        %v318 = vsel %vm313, %v302, 0
        %320 = vmatprep.subr.bf16.mxu0 0
        %321 = vmatpush1.bf16.msra.mxu0 0
        %322 = vmatprep.subr.bf16.mxu0 0
        %323 = vmatpush1.bf16.msra.mxu0 0
        %324 = vmatprep.subr.bf16.mxu0 0
        %325 = vmatpush1.bf16.msra.mxu0 0
        %326 = vmatprep.subr.bf16.mxu0 0
        %327 = vmatpush1.bf16.msra.mxu0 0
        %328 = vmatprep.subr.bf16.mxu0 0
        %329 = vmatpush1.bf16.msra.mxu0 0
        %330 = vmatprep.subr.bf16.mxu0 0
        %331 = vmatpush1.bf16.msra.mxu0 0
        %332 = vmatprep.subr.bf16.mxu0 0
        %333 = vmatpush1.bf16.msra.mxu0 0
        %334 = vmatprep.subr.bf16.mxu0 %v318
        %335 = vmatpush1.bf16.msra.mxu0 %v315
        %336 = vmatprep.subr.bf16.mxu0 0
        %337 = vmatpush2.bf16.msra.mxu0 0
        %338 = vmatprep.subr.bf16.mxu0 0
        %339 = vmatpush2.bf16.msra.mxu0 0
        %340 = vmatprep.subr.bf16.mxu0 0
        %341 = vmatpush2.bf16.msra.mxu0 0
        %342 = vmatprep.subr.bf16.mxu0 0
        %343 = vmatpush2.bf16.msra.mxu0 0
        %344 = vmatprep.subr.bf16.mxu0 0
        %345 = vmatpush2.bf16.msra.mxu0 0
        %346 = vmatprep.subr.bf16.mxu0 0
        %347 = vmatpush2.bf16.msra.mxu0 0
        %348 = vmatprep.subr.bf16.mxu0 0
        %349 = vmatpush2.bf16.msra.mxu0 0
        %350 = vmatprep.subr.bf16.mxu0 0
        %351 = vmatpush2.bf16.msra.mxu0 0
        %352 = vmatprep.mubr.bf16.mxu0 0
        %353 = vmatmul.mubr.bf16.gmra.mxu0 %v311
        %v354 = vpop.f32.mrf.mxu0
        %v355 = vadd.f32 %v307, %v354
        %v356 = vpop.f32.mrf.mxu0
        %v357 = vadd.f32 %v307, %v356
        %v358 = vpop.f32.mrf.mxu0
        %v359 = vpop.f32.mrf.mxu0
        %360 = vdwg.mxu0
        %v361 = vxor.u32 %v355, 2147483648
        %v362 = vxor.u32 %v357, 2147483648
        %v363 = vmul.f32 %v361, 1.442695
        %v364 = vpow.pop %v363
        %v365 = vmul.f32 %v362, 1.442695
        %v366 = vpow.pop %v365
        %v367 = vadd.f32 %v364, 1.0
        %v368 = vadd.f32 %v366, 1.0
        %v369 = vrcp.pop %v367
        %v370 = vmul.f32 1.0, %v369
        %v371 = vrcp.pop %v368
        %v372 = vmul.f32 1.0, %v371
        %v373 = vmul.f32 %v355, %v370
        %v374 = vmul.f32 %v357, %v372
        %377 = vrot.lane.b32.xlu0 %v373, 17
        %v378 = vpop.permute.xlu0 %377
        %379 = vrot.lane.b32.xlu0 %v374, 17
        %v380 = vpop.permute.xlu0 %379
        %vm381 = vcmask 138240
        %v382 = vsel %vm381, %v378, %v380
        %v386 = vsel %vm381, 0.0, %v378
        %v387 = vsel %vm381, %v380, 0.0
        %v388 = vlaneseq
        %v389 = vand.u32 %v388, 127
        %v390 = vadd.s32 %v389, 128
        %vm391 = vcmp.lt.s32.totalorder %v389, 0
        %v392 = vsub.s32 0, %v389
        %v393 = vsel %vm391, %v392, %v389
        %v394 = vshrl.u32 %v393, 4
        %v395 = vand.u32 %v393, 15
        %v396 = vsub.s32 0, %v395
        %v397 = vsel %vm391, %v396, %v395
        %vm398 = vcmp.lt.s32.totalorder %v390, 0
        %v399 = vsub.s32 0, %v390
        %v400 = vsel %vm398, %v399, %v390
        %v401 = vshrl.u32 %v400, 4
        %v402 = vand.u32 %v400, 15
        %v403 = vsub.s32 0, %v402
        %v404 = vsel %vm398, %v403, %v402
        %vm405 = vcmp.ne.s32.totalorder %v397, 0
        %vm406 = vcmp.ne.s32.totalorder %v404, 0
        %vm407 = vcmp.lt.s32.totalorder %v397, 0
        %vm408 = vcmp.lt.s32.totalorder %v404, 0
        %vm409 = vmand %vm407, %vm405
        %vm410 = vmand %vm408, %vm406
        %v411 = vadd.s32 %v397, 16
        %v412 = vadd.s32 %v404, 16
        %v413 = vsel %vm409, %v411, %v397
        %v414 = vsel %vm410, %v412, %v404
        %vm415 = vcmp.ne.s32.totalorder %v413, 0
        %vm416 = vcmp.ne.s32.totalorder %v414, 0
        %vm417 = vcmp.ne.s32.totalorder %v413, 15
        %vm418 = vcmp.ne.s32.totalorder %v414, 15
        %v419 = vsel %vm415, 1, 0
        %v420 = vsel %vm416, 1, 0
        %vm421 = vcmp.eq.s32.totalorder %v419, 1
        %vm422 = vcmp.eq.s32.totalorder %v420, 1
        %v423 = vsel %vm421, %v386, 0.0
        %v424 = vsel %vm422, %v382, 0.0
        %v425 = vsel %vm417, 1, 0
        %v426 = vsel %vm418, 1, 0
        %vm427 = vcmp.eq.s32.totalorder %v425, 1
        %vm428 = vcmp.eq.s32.totalorder %v426, 1
        %431 = vrot.lane.b32.xlu0 %v386, 126
        %v432 = vpop.permute.xlu0 %431
        %433 = vrot.lane.b32.xlu0 %v382, 126
        %v434 = vpop.permute.xlu0 %433
        %435 = vrot.lane.b32.xlu0 %v387, 126
        %v436 = vpop.permute.xlu0 %435
        %vm437 = vcmask 1031168
        %v438 = vsel %vm437, %v432, %v434
        %v439 = vsel %vm437, %v434, %v436
        %v442 = vsel %vm427, %v438, 0.0
        %v443 = vsel %vm428, %v439, 0.0
        %444 = vrot.lane.b32.xlu0 %v386, 112
        %v445 = vpop.permute.xlu0 %444
        %446 = vrot.lane.b32.xlu0 %v382, 112
        %v447 = vpop.permute.xlu0 %446
        %448 = vrot.lane.b32.xlu0 %v387, 112
        %v449 = vpop.permute.xlu0 %448
        %vm450 = vcmask 916480
        %v451 = vsel %vm450, %v445, %v447
        %v452 = vsel %vm450, %v447, %v449
        %v455 = vsel %vm421, %v451, 0.0
        %v456 = vsel %vm422, %v452, 0.0
        %457 = vrot.lane.b32.xlu0 %v386, 110
        %v458 = vpop.permute.xlu0 %457
        %459 = vrot.lane.b32.xlu0 %v382, 110
        %v460 = vpop.permute.xlu0 %459
        %461 = vrot.lane.b32.xlu0 %v387, 110
        %v462 = vpop.permute.xlu0 %461
        %vm463 = vcmask 900096
        %v464 = vsel %vm463, %v458, %v460
        %v465 = vsel %vm463, %v460, %v462
        %v468 = vsel %vm427, %v464, 0.0
        %v469 = vsel %vm428, %v465, 0.0
        %470 = vrot.lane.b32.xlu0 %v386, 96
        %v471 = vpop.permute.xlu0 %470
        %472 = vrot.lane.b32.xlu0 %v382, 96
        %v473 = vpop.permute.xlu0 %472
        %474 = vrot.lane.b32.xlu0 %v387, 96
        %v475 = vpop.permute.xlu0 %474
        %vm476 = vcmask 785408
        %v477 = vsel %vm476, %v471, %v473
        %v478 = vsel %vm476, %v473, %v475
        %v481 = vsel %vm421, %v477, 0.0
        %v482 = vsel %vm422, %v478, 0.0
        %483 = vrot.lane.b32.xlu0 %v386, 94
        %v484 = vpop.permute.xlu0 %483
        %485 = vrot.lane.b32.xlu0 %v382, 94
        %v486 = vpop.permute.xlu0 %485
        %487 = vrot.lane.b32.xlu0 %v387, 94
        %v488 = vpop.permute.xlu0 %487
        %vm489 = vcmask 769024
        %v490 = vsel %vm489, %v484, %v486
        %v491 = vsel %vm489, %v486, %v488
        %v494 = vsel %vm427, %v490, 0.0
        %v495 = vsel %vm428, %v491, 0.0
        %v496 = vrot.slane %v386, 6
        %v497 = vrot.slane %v382, 6
        %v498 = vrot.slane %v387, 6
        %499 = vrot.lane.b32.xlu0 %v496, 127
        %v500 = vpop.permute.xlu0 %499
        %501 = vrot.lane.b32.xlu0 %v497, 127
        %v502 = vpop.permute.xlu0 %501
        %503 = vrot.lane.b32.xlu0 %v498, 127
        %v504 = vpop.permute.xlu0 %503
        %vm505 = vcmask 1039360
        %v506 = vsel %vm505, %v500, %v502
        %v507 = vsel %vm505, %v502, %v504
        %v512 = vrot.slane %v442, 4
        %v513 = vrot.slane %v443, 4
        %v518 = vrot.slane %v455, 2
        %v519 = vrot.slane %v456, 2
        %522 = vrot.lane.b32.xlu0 %v386, 111
        %v523 = vpop.permute.xlu0 %522
        %524 = vrot.lane.b32.xlu0 %v382, 111
        %v525 = vpop.permute.xlu0 %524
        %526 = vrot.lane.b32.xlu0 %v387, 111
        %v527 = vpop.permute.xlu0 %526
        %vm528 = vcmask 908288
        %v529 = vsel %vm528, %v523, %v525
        %v530 = vsel %vm528, %v525, %v527
        %v535 = vrot.slane %v468, 6
        %v536 = vrot.slane %v469, 6
        %v541 = vrot.slane %v481, 4
        %v542 = vrot.slane %v482, 4
        %v545 = vrot.slane %v386, 2
        %v546 = vrot.slane %v382, 2
        %v547 = vrot.slane %v387, 2
        %548 = vrot.lane.b32.xlu0 %v545, 95
        %v549 = vpop.permute.xlu0 %548
        %550 = vrot.lane.b32.xlu0 %v546, 95
        %v551 = vpop.permute.xlu0 %550
        %552 = vrot.lane.b32.xlu0 %v547, 95
        %v553 = vpop.permute.xlu0 %552
        %vm554 = vcmask 777216
        %v555 = vsel %vm554, %v549, %v551
        %v556 = vsel %vm554, %v551, %v553
        %v559 = vsel %vm313, %v423, %v506
        %v560 = vsel %vm313, %v424, %v507
        %vm561 = vcmask 1043456
        %v562 = vsel %vm561, %v559, %v512
        %v563 = vsel %vm561, %v560, %v513
        %vm564 = vcmask 1045504
        %v565 = vsel %vm564, %v562, %v518
        %v566 = vsel %vm564, %v563, %v519
        %v567 = vsel %vm313, %v529, %v535
        %v568 = vsel %vm313, %v530, %v536
        %v569 = vsel %vm561, %v567, %v541
        %v570 = vsel %vm561, %v568, %v542
        %v571 = vsel %vm564, %v569, %v555
        %v572 = vsel %vm564, %v570, %v556
        %v573 = vpack.c.bf16 %v571, %v565
        %v574 = vpack.c.bf16 %v572, %v566
        %v575 = vpack.c.bf16 %v494, %v494
        %v576 = vpack.c.bf16 %v495, %v495
        %v577 = vld [vmem:[%s3] sm:$0x1]
        %v578 = vld [vmem:[%s4] sm:$0x3]
        %580 = vset.pattern.permute.xlu0 0
        %581 = vperm.xlu0 %580, %v578
        %v582 = vpop.permute.xlu0 %581
        %vm584 = vcmask 146432
        %v586 = vsel %vm584, %v577, 0
        %vm588 = vcmask 1040384
        %v590 = vsel %vm588, %v575, 0
        %v593 = vsel %vm588, %v576, 0
        %595 = vmatprep.subr.bf16.mxu0 0
        %596 = vmatpush1.bf16.msra.mxu0 0
        %597 = vmatprep.subr.bf16.mxu0 0
        %598 = vmatpush1.bf16.msra.mxu0 0
        %599 = vmatprep.subr.bf16.mxu0 0
        %600 = vmatpush1.bf16.msra.mxu0 0
        %601 = vmatprep.subr.bf16.mxu0 0
        %602 = vmatpush1.bf16.msra.mxu0 0
        %603 = vmatprep.subr.bf16.mxu0 0
        %604 = vmatpush1.bf16.msra.mxu0 0
        %605 = vmatprep.subr.bf16.mxu0 0
        %606 = vmatpush1.bf16.msra.mxu0 0
        %607 = vmatprep.subr.bf16.mxu0 %v593
        %608 = vmatpush1.bf16.msra.mxu0 %v590
        %609 = vmatprep.subr.bf16.mxu0 %v574
        %610 = vmatpush1.bf16.msra.mxu0 %v573
        %611 = vmatprep.subr.bf16.mxu0 0
        %612 = vmatpush2.bf16.msra.mxu0 0
        %613 = vmatprep.subr.bf16.mxu0 0
        %614 = vmatpush2.bf16.msra.mxu0 0
        %615 = vmatprep.subr.bf16.mxu0 0
        %616 = vmatpush2.bf16.msra.mxu0 0
        %617 = vmatprep.subr.bf16.mxu0 0
        %618 = vmatpush2.bf16.msra.mxu0 0
        %619 = vmatprep.subr.bf16.mxu0 0
        %620 = vmatpush2.bf16.msra.mxu0 0
        %621 = vmatprep.subr.bf16.mxu0 0
        %622 = vmatpush2.bf16.msra.mxu0 0
        %623 = vmatprep.subr.bf16.mxu0 0
        %624 = vmatpush2.bf16.msra.mxu0 0
        %625 = vmatprep.subr.bf16.mxu0 0
        %626 = vmatpush2.bf16.msra.mxu0 0
        %627 = vmatprep.mubr.bf16.mxu0 0
        %628 = vmatmul.mubr.bf16.gmra.mxu0 %v586
        %v629 = vpop.f32.mrf.mxu0
        %v630 = vadd.f32 %v582, %v629
        %v631 = vpop.f32.mrf.mxu0
        %v632 = vadd.f32 %v582, %v631
        %v633 = vpop.f32.mrf.mxu0
        %v634 = vpop.f32.mrf.mxu0
        %635 = vdwg.mxu0
        %v636 = vxor.u32 %v630, 2147483648
        %v637 = vxor.u32 %v632, 2147483648
        %v638 = vmul.f32 %v636, 1.442695
        %v639 = vpow.pop %v638
        %v640 = vmul.f32 %v637, 1.442695
        %v641 = vpow.pop %v640
        %v642 = vadd.f32 %v639, 1.0
        %v643 = vadd.f32 %v641, 1.0
        %v644 = vrcp.pop %v642
        %v645 = vmul.f32 1.0, %v644
        %v646 = vrcp.pop %v643
        %v647 = vmul.f32 1.0, %v646
        %v648 = vmul.f32 %v630, %v645
        %v649 = vmul.f32 %v632, %v647
        %v650 = vld [vmem:[%s5] sm:$0x3]
        %v651 = vpack.c.bf16 %v648, %v648
        %v652 = vpack.c.bf16 %v649, %v649
        %v653 = vld [vmem:[%s6] sm:$0xf]
        %655 = vset.pattern.permute.xlu0 0
        %656 = vperm.xlu0 %655, %v653
        %v657 = vpop.permute.xlu0 %656
        %vm659 = vcmask 15360
        %v661 = vsel %vm659, %v650, 0
        %v664 = vsel %vm588, %v651, 0
        %v667 = vsel %vm588, %v652, 0
        %669 = vmatprep.subr.bf16.mxu0 0
        %670 = vmatpush1.bf16.msra.mxu0 0
        %671 = vmatprep.subr.bf16.mxu0 0
        %672 = vmatpush1.bf16.msra.mxu0 0
        %673 = vmatprep.subr.bf16.mxu0 0
        %674 = vmatpush1.bf16.msra.mxu0 0
        %675 = vmatprep.subr.bf16.mxu0 0
        %676 = vmatpush1.bf16.msra.mxu0 0
        %677 = vmatprep.subr.bf16.mxu0 0
        %678 = vmatpush1.bf16.msra.mxu0 0
        %679 = vmatprep.subr.bf16.mxu0 0
        %680 = vmatpush1.bf16.msra.mxu0 0
        %681 = vmatprep.subr.bf16.mxu0 0
        %682 = vmatpush1.bf16.msra.mxu0 0
        %683 = vmatprep.subr.bf16.mxu0 %v667
        %684 = vmatpush1.bf16.msra.mxu0 %v664
        %685 = vmatprep.subr.bf16.mxu0 0
        %686 = vmatpush2.bf16.msra.mxu0 0
        %687 = vmatprep.subr.bf16.mxu0 0
        %688 = vmatpush2.bf16.msra.mxu0 0
        %689 = vmatprep.subr.bf16.mxu0 0
        %690 = vmatpush2.bf16.msra.mxu0 0
        %691 = vmatprep.subr.bf16.mxu0 0
        %692 = vmatpush2.bf16.msra.mxu0 0
        %693 = vmatprep.subr.bf16.mxu0 0
        %694 = vmatpush2.bf16.msra.mxu0 0
        %695 = vmatprep.subr.bf16.mxu0 0
        %696 = vmatpush2.bf16.msra.mxu0 0
        %697 = vmatprep.subr.bf16.mxu0 0
        %698 = vmatpush2.bf16.msra.mxu0 0
        %699 = vmatprep.subr.bf16.mxu0 0
        %700 = vmatpush2.bf16.msra.mxu0 0
        %701 = vmatprep.mubr.bf16.mxu0 0
        %702 = vmatmul.mubr.bf16.gmra.mxu0 %v661
        %v703 = vpop.f32.mrf.mxu0
        %v704 = vadd.f32 %v657, %v703
        %v705 = vpop.f32.mrf.mxu0
        %v706 = vadd.f32 %v657, %v705
        %v707 = vpop.f32.mrf.mxu0
        %v708 = vpop.f32.mrf.mxu0
        %709 = vdwg.mxu0
        %v710 = vxor.u32 %v704, 2147483648
        %v711 = vxor.u32 %v706, 2147483648
        %v712 = vmul.f32 %v710, 1.442695
        %v713 = vpow.pop %v712
        %v714 = vmul.f32 %v711, 1.442695
        %v715 = vpow.pop %v714
        %v716 = vadd.f32 %v713, 1.0
        %v717 = vadd.f32 %v715, 1.0
        %v718 = vrcp.pop %v716
        %v719 = vmul.f32 1.0, %v718
        %v720 = vrcp.pop %v717
        %v721 = vmul.f32 1.0, %v720
        %v722 = vmul.f32 %v704, %v719
        %v723 = vmul.f32 %v706, %v721
        %v724 = vadd.f32 %v722, %v296
        %v725 = vadd.f32 %v723, %v299
        %v728 = vcombine.low %v724, %v725
        %730 = vst [vmem:[%s294] sm:$0xff] %v728
        %s731 = sand.u32 %s184, 1
        %s732 = scalar_lea.sflag [#allocation4], %s731
        %s733 = sand.u32 %s184, 1
        %s734 = smul.addr %s733, 8
        %s735 = scalar_lea.vmem [#allocation5], %s734
        // Predicated region
        $region53: #{tpu_custom_call.1} parent=47 // pred_check
          %p736 = pneg %p194
        $region54: #{tpu_custom_call.1} parent=47 // pred_check_branch
          %738 = sbr.rel (%p736) target = $region56
        $region55: #{tpu_custom_call.1} parent=47 // pred_region
          %s740 = ssub.s32 128, 128
          %741 = vsyncadd %s732, %s740
          %s742 = smul.addr %s24, 2
          %s743 = smul.addr %s742, 64
          %s744 = scalar_lea.hbm %s7, %s743
          %s746 = sshll.u32 %s735, 4
          %s747 = int_to_ptr.vmem [resolvable:$true] %s746
          %749 = dma.vmem_to_hbm [thread:$0]  %s747, 128, %s744, %s732
        $region56: #{tpu_custom_call.1} parent=47 // pred_fallthru
          _
      $region48: #{tpu_custom_call.1} parent=5 // pred_fallthru
        _
      %p750 = scmp.le.s32.totalorder 2, %s19
      // Predicated region
      $region57: #{tpu_custom_call.1} parent=5 // pred_check
        %p751 = pneg %p750
      $region58: #{tpu_custom_call.1} parent=5 // pred_check_branch
        %753 = sbr.rel (%p751) target = $region60
      $region59: #{tpu_custom_call.1} parent=5 // pred_region
        %s754 = ssub.s32 %s19, 2
        // Predicated region
        $region61: #{tpu_custom_call.1} parent=59 // pred_check
          %p755 = pneg %p200
        $region62: #{tpu_custom_call.1} parent=59 // pred_check_branch
          %757 = sbr.rel (%p755) target = $region64
        $region63: #{tpu_custom_call.1} parent=59 // pred_region
          %s758 = sand.u32 %s185, 1
          %s759 = scalar_lea.sflag [#allocation4], %s758
          %s760 = sand.u32 %s185, 1
          %s761 = smul.addr %s760, 8
          %s762 = scalar_lea.vmem [#allocation5], %s761
          %763 = dma.done %s759, 128
        $region64: #{tpu_custom_call.1} parent=59 // pred_fallthru
          _
      $region60: #{tpu_custom_call.1} parent=5 // pred_fallthru
        _
    $region6: #{tpu_custom_call.1} parent=1 // loop_footer
      %s23 = sadd.s32 1, %s19
    $region7: #{tpu_custom_call.1} parent=1 // loop_footer_branch
      %18 = sbr.rel target = $region3
    $region8: #{tpu_custom_call.1} parent=1 // loop_exit
      _
    %764 = vsyncpa [#allocation3], 1
    %s765 = scalar_lea.sflag [#allocation3], 1
    %766 = vsyncpa %s765, 1
    %767 = vsyncpa [#allocation4], 1
    %s768 = scalar_lea.sflag [#allocation4], 1
    %769 = vsyncpa %s768, 1

</llo_original>
